<compile_context>
chip_gen: v6e
topology: v6e:2x2x1
jax: 0.10.0
libtpu: 0.0.40
codegen_flags: <defaults>
</compile_context>

<pallas_src>
import functools

import jax
import jax.numpy as jnp
import numpy as np
from jax.experimental import pallas as pl
from jax.experimental.pallas import tpu as pltpu

# ----------------------------- model sizes -----------------------------------
NUM_FEATURES = 7
HIDDEN_UNITS = 3
NUM_LAYERS = 1  # fixed by the module

# padded (TPU-friendly) sizes
B_PAD = 8               # sublane multiple (batch)
F_PAD = 8               # feature padding (was 128): ~16x less x HBM traffic
GATE_SLAB = 32          # lanes reserved per gate (>= HIDDEN_UNITS)
GATE_W = 4 * GATE_SLAB  # 128: all four gates packed into one vreg width
OUT_PAD = 128           # lane width of the linear output slab
HROW_PAD = 8            # sublane padding for the tiny (H, ...) weight matrices
MAX_T_CHUNK = 32        # timesteps per grid step (32*8 = 256 MXU rows per chunk)

assert HIDDEN_UNITS <= GATE_SLAB
assert NUM_FEATURES <= F_PAD


# ----------------------------- Pallas kernel ---------------------------------
def _lstm_kernel(x_ref, w_ih_ref, w_hh_ref, b_ref, w_out_ref, b_out_ref,
                 out_ref, xw_ref, h_ref, c_ref, *, t_chunk, t_total, t_cut):
    """One T-chunk of the LSTM recurrence; (h, c) persist in VMEM across chunks."""
    B = B_PAD
    H = HIDDEN_UNITS
    chunk = pl.program_id(0)

    # ---- chunk 0: zero-init the carried state (h0 = c0 = 0 as in the module) --
    @pl.when(chunk == 0)
    def _():
        h_ref[...] = jnp.zeros_like(h_ref)
        c_ref[...] = jnp.zeros_like(c_ref)

    # ---- (1) input projection for this chunk: one MXU matmul, bias folded in --
    xw_ref[...] = (
        jnp.dot(x_ref[...], w_ih_ref[...], preferred_element_type=jnp.float32)
        + b_ref[...]
    )

    # ---- (2) hoist recurrent-weight row broadcasts out of the step loop -------
    w_hh_rows = [jnp.broadcast_to(w_hh_ref[j:j + 1, :], (B, GATE_W))
                 for j in range(H)]

    # ---- (3) serial recurrence: fully unrolled, (h, c) carried in vregs -------
    h = h_ref[...]
    c = c_ref[...]
    for t in range(t_chunk):
        # recurrent contribution: true contraction depth is H=3 -> 3 mul-adds (VPU)
        rec = h[:, 0:1] * w_hh_rows[0]
        for j in range(1, H):
            rec = rec + h[:, j:j + 1] * w_hh_rows[j]

        row = t * B
        gates = xw_ref[row:row + B, :] + rec                  # (B, 128)

        # 3 EUP passes per step (was 5): one full-vreg sigmoid covers i/f/o
        s = jax.nn.sigmoid(gates)
        i_g = s[:, 0 * GATE_SLAB:1 * GATE_SLAB]
        f_g = s[:, 1 * GATE_SLAB:2 * GATE_SLAB]
        o_g = s[:, 3 * GATE_SLAB:4 * GATE_SLAB]
        g_g = jnp.tanh(gates[:, 2 * GATE_SLAB:3 * GATE_SLAB])

        c_new = f_g * c + i_g * g_g
        h_new = o_g * jnp.tanh(c_new)

        if t >= t_cut:
            # This static step may lie past the real sequence end in the last
            # chunk: keep (h, c) unchanged there (cheap scalar-predicated select).
            valid = (chunk * t_chunk + t) < t_total
            h = jnp.where(valid, h_new, h)
            c = jnp.where(valid, c_new, c)
        else:
            h, c = h_new, c_new

    h_ref[...] = h
    c_ref[...] = c

    # ---- (4) final Linear on hn[0]: depth-3 contraction on the VPU ------------
    @pl.when(chunk == pl.num_programs(0) - 1)
    def _():
        pred = jnp.broadcast_to(b_out_ref[...], (B, OUT_PAD))
        for j in range(H):
            pred = pred + h[:, j:j + 1] * jnp.broadcast_to(
                w_out_ref[j:j + 1, :], (B, OUT_PAD))
        out_ref[...] = pred


# ----------------------------- host wrapper ----------------------------------
@jax.jit
def energy_lstm_forward(x, params):
    """x: (B, T, F) float32  ->  (B,) float32, matching energyLSTM.forward."""
    w_ih, w_hh, b_ih, b_hh, w_lin, b_lin = params
    B, T, F = x.shape
    H = HIDDEN_UNITS
    assert F == NUM_FEATURES
    # TODO(synk): add a 'parallel' batch-tile grid axis for B > B_PAD (2 TCs on v7x).
    assert B <= B_PAD, "batch > 8 needs a batch grid axis"

    # chunking of the time axis
    t_chunk = T if T <= MAX_T_CHUNK else MAX_T_CHUNK
    num_chunks = pl.cdiv(T, t_chunk)
    t_pad = num_chunks * t_chunk
    t_cut = T - (num_chunks - 1) * t_chunk      # first step index that can be invalid

    # ---- pack x: (B, T, F) -> time-major, flattened (T_pad*B_PAD, F_PAD=8) ----
    # TODO(synk): accept time-major input directly to avoid this transpose for huge T.
    x_tm = jnp.transpose(x, (1, 0, 2)).astype(jnp.float32)       # (T, B, F)
    x_p = jnp.zeros((t_pad, B_PAD, F_PAD), jnp.float32)
    x_p = x_p.at[:T, :B, :F].set(x_tm).reshape(t_pad * B_PAD, F_PAD)

    # ---- pack weights into the 128-lane packed-gate layout --------------------
    # PyTorch weight_ih_l0: (4H, F), rows grouped [i; f; g; o].  Gate k occupies
    # lanes [k*GATE_SLAB, k*GATE_SLAB + H); padding lanes/rows stay exactly zero
    # so padded state lanes never leak into real lanes.
    w_ih_p = jnp.zeros((F_PAD, GATE_W), jnp.float32)
    w_hh_p = jnp.zeros((HROW_PAD, GATE_W), jnp.float32)   # row j = hidden unit j
    b_p = jnp.zeros((1, GATE_W), jnp.float32)
    for k in range(4):
        sl = slice(k * GATE_SLAB, k * GATE_SLAB + H)
        w_ih_p = w_ih_p.at[:F, sl].set(w_ih[k * H:(k + 1) * H, :].T)
        w_hh_p = w_hh_p.at[:H, sl].set(w_hh[k * H:(k + 1) * H, :].T)
        b_p = b_p.at[0, sl].set(b_ih[k * H:(k + 1) * H] + b_hh[k * H:(k + 1) * H])

    # Linear: weight (1, H), bias (1,)
    w_out_p = jnp.zeros((HROW_PAD, OUT_PAD), jnp.float32)
    w_out_p = w_out_p.at[:H, 0].set(w_lin[0, :])
    b_out_p = jnp.zeros((1, OUT_PAD), jnp.float32)
    b_out_p = b_out_p.at[0, 0].set(b_lin[0])

    # ---- Pallas call: T chunked on an 'arbitrary' grid axis, h/c in scratch ---
    kernel = functools.partial(_lstm_kernel, t_chunk=t_chunk, t_total=T, t_cut=t_cut)

    grid_spec = pltpu.PrefetchScalarGridSpec(
        num_scalar_prefetch=0,
        grid=(num_chunks,),
        in_specs=[
            pl.BlockSpec((t_chunk * B_PAD, F_PAD), lambda i: (i, 0)),
            pl.BlockSpec((F_PAD, GATE_W), lambda i: (0, 0)),
            pl.BlockSpec((HROW_PAD, GATE_W), lambda i: (0, 0)),
            pl.BlockSpec((1, GATE_W), lambda i: (0, 0)),
            pl.BlockSpec((HROW_PAD, OUT_PAD), lambda i: (0, 0)),
            pl.BlockSpec((1, OUT_PAD), lambda i: (0, 0)),
        ],
        out_specs=pl.BlockSpec((B_PAD, OUT_PAD), lambda i: (0, 0)),
        scratch_shapes=[
            pltpu.VMEM((t_chunk * B_PAD, GATE_W), jnp.float32),  # x@W_ih + b, one chunk
            pltpu.VMEM((B_PAD, GATE_SLAB), jnp.float32),         # carried h
            pltpu.VMEM((B_PAD, GATE_SLAB), jnp.float32),         # carried c
        ],
    )

    cost = pl.CostEstimate(
        flops=2 * t_pad * B_PAD * F_PAD * GATE_W + 14 * t_pad * B_PAD * GATE_W,
        transcendentals=3 * t_pad * B_PAD * GATE_W,
        bytes_accessed=4 * (x_p.size + w_ih_p.size + w_hh_p.size + b_p.size
                            + w_out_p.size + b_out_p.size + B_PAD * OUT_PAD),
    )

    out_p = pl.pallas_call(
        kernel,
        out_shape=jax.ShapeDtypeStruct((B_PAD, OUT_PAD), jnp.float32),
        grid_spec=grid_spec,
        compiler_params=pltpu.CompilerParams(
            dimension_semantics=("arbitrary",)),
        cost_estimate=cost,
    )(x_p, w_ih_p, w_hh_p, b_p, w_out_p, b_out_p)

    return out_p[:B, 0]  # .flatten() -> (B,)


# ----------------------------- reference (pure JAX) ---------------------------
def reference_forward(x, params):
    w_ih, w_hh, b_ih, b_hh, w_lin, b_lin = params
    B, T, F = x.shape
    H = HIDDEN_UNITS
    h = jnp.zeros((B, H), jnp.float32)
    c = jnp.zeros((B, H), jnp.float32)
    for t in range(T):
        g = x[:, t] @ w_ih.T + b_ih + h @ w_hh.T + b_hh
        i_g = jax.nn.sigmoid(g[:, 0 * H:1 * H])
        f_g = jax.nn.sigmoid(g[:, 1 * H:2 * H])
        g_g = jnp.tanh(g[:, 2 * H:3 * H])
        o_g = jax.nn.sigmoid(g[:, 3 * H:4 * H])
        c = f_g * c + i_g * g_g
        h = o_g * jnp.tanh(c)
    return (h @ w_lin.T + b_lin).reshape(-1)


# ----------------------------- param init ------------------------------------
def init_params(key):
    """Deterministic init mirroring PyTorch's U(-1/sqrt(H), 1/sqrt(H))."""
    H, F = HIDDEN_UNITS, NUM_FEATURES
    k = 1.0 / np.sqrt(H)
    ks = jax.random.split(key, 6)
    w_ih = jax.random.uniform(ks[0], (4 * H, F), jnp.float32, -k, k)
    w_hh = jax.random.uniform(ks[1], (4 * H, H), jnp.float32, -k, k)
    b_ih = jax.random.uniform(ks[2], (4 * H,), jnp.float32, -k, k)
    b_hh = jax.random.uniform(ks[3], (4 * H,), jnp.float32, -k, k)
    w_lin = jax.random.uniform(ks[4], (1, H), jnp.float32, -k, k)
    b_lin = jax.random.uniform(ks[5], (1,), jnp.float32, -k, k)
    return (w_ih, w_hh, b_ih, b_hh, w_lin, b_lin)


# ----------------------------- main -------------------------------------------
if __name__ == "__main__":
    key = jax.random.PRNGKey(0)
    k_param, k_x = jax.random.split(key)

    params = init_params(k_param)

    B, T, F = 2, 8, NUM_FEATURES
    x = jax.random.normal(k_x, (B, T, F), jnp.float32)

    out = energy_lstm_forward(x, params)
    out = jax.block_until_ready(out)

    ref = reference_forward(x, params)
    np.testing.assert_allclose(np.asarray(out), np.asarray(ref),
                               rtol=1e-5, atol=1e-5)
    assert out.shape == (B,)
    print("KERNEL_OK")
</pallas_src>

<mosaic_0001>
module attributes {stable_mosaic.version = 11 : i64} {
  func.func @_lstm_kernel(%arg0: i32, %arg1: memref<64x8xf32, #tpu.memory_space<vmem>>, %arg2: memref<8x128xf32, #tpu.memory_space<vmem>>, %arg3: memref<8x128xf32, #tpu.memory_space<vmem>>, %arg4: memref<1x128xf32, #tpu.memory_space<vmem>>, %arg5: memref<8x128xf32, #tpu.memory_space<vmem>>, %arg6: memref<1x128xf32, #tpu.memory_space<vmem>>, %arg7: memref<8x128xf32, #tpu.memory_space<vmem>>, %arg8: memref<64x128xf32, #tpu.memory_space<vmem>>, %arg9: memref<8x32xf32, #tpu.memory_space<vmem>>, %arg10: memref<8x32xf32, #tpu.memory_space<vmem>>) attributes {dimension_semantics = [#tpu.dimension_semantics<arbitrary>], iteration_bounds = array<i64: 1>, scalar_prefetch = 0 : i64, scratch_operands = 3 : i64, tpu.core_type = #tpu.core_type<tc>, window_params = [{transform_indices = @transform_0, window_bounds = array<i64: 64, 8>}, {pipeline_mode = #tpu.pipeline_mode<synchronous>, transform_indices = @transform_1, window_bounds = array<i64: 8, 128>}, {pipeline_mode = #tpu.pipeline_mode<synchronous>, transform_indices = @transform_2, window_bounds = array<i64: 8, 128>}, {pipeline_mode = #tpu.pipeline_mode<synchronous>, transform_indices = @transform_3, window_bounds = array<i64: 1, 128>}, {pipeline_mode = #tpu.pipeline_mode<synchronous>, transform_indices = @transform_4, window_bounds = array<i64: 8, 128>}, {pipeline_mode = #tpu.pipeline_mode<synchronous>, transform_indices = @transform_5, window_bounds = array<i64: 1, 128>}, {pipeline_mode = #tpu.pipeline_mode<synchronous>, transform_indices = @transform_6, window_bounds = array<i64: 8, 128>}]} {
    %c0_i32 = arith.constant 0 : i32
    %0 = arith.cmpi eq, %arg0, %c0_i32 : i32
    %1 = arith.extui %0 : i1 to i32
    %c0_i32_0 = arith.constant 0 : i32
    %2 = arith.cmpi ne, %1, %c0_i32_0 : i32
    scf.if %2 {
      %cst_39 = arith.constant 0.000000e+00 : f32
      %250 = vector.broadcast %cst_39 : f32 to vector<8x32xf32>
      %c0_40 = arith.constant 0 : index
      %c0_41 = arith.constant 0 : index
      %251 = vector.load %arg9[%c0_40, %c0_41] : memref<8x32xf32, #tpu.memory_space<vmem>>, vector<8x32xf32>
      tpu.vector_store %arg9[%c0_40, %c0_41], %250 {strides = array<i32>} : memref<8x32xf32, #tpu.memory_space<vmem>>, vector<8x32xf32>,
      %cst_42 = arith.constant 0.000000e+00 : f32
      %252 = vector.broadcast %cst_42 : f32 to vector<8x32xf32>
      %c0_43 = arith.constant 0 : index
      %c0_44 = arith.constant 0 : index
      %253 = vector.load %arg10[%c0_43, %c0_44] : memref<8x32xf32, #tpu.memory_space<vmem>>, vector<8x32xf32>
      tpu.vector_store %arg10[%c0_43, %c0_44], %252 {strides = array<i32>} : memref<8x32xf32, #tpu.memory_space<vmem>>, vector<8x32xf32>,
    } else {
    }
    %c0 = arith.constant 0 : index
    %c0_1 = arith.constant 0 : index
    %3 = vector.load %arg1[%c0, %c0_1] : memref<64x8xf32, #tpu.memory_space<vmem>>, vector<64x8xf32>
    %c0_2 = arith.constant 0 : index
    %c0_3 = arith.constant 0 : index
    %4 = vector.load %arg2[%c0_2, %c0_3] : memref<8x128xf32, #tpu.memory_space<vmem>>, vector<8x128xf32>
    %cst = arith.constant dense<0.000000e+00> : vector<64x128xf32>
    %5 = tpu.matmul %3, %4, %cst {dimension_numbers = #tpu.dot_dimension_numbers<[1], [0], [0], [1], [0, 0, 1, 1], [], []>} : vector<64x8xf32>, vector<8x128xf32>, vector<64x128xf32> -> vector<64x128xf32>
    %c0_4 = arith.constant 0 : index
    %c0_5 = arith.constant 0 : index
    %6 = vector.load %arg4[%c0_4, %c0_5] : memref<1x128xf32, #tpu.memory_space<vmem>>, vector<1x128xf32>
    %7 = vector.broadcast %6 : vector<1x128xf32> to vector<64x128xf32>
    %8 = arith.addf %5, %7 : vector<64x128xf32>
    %c0_6 = arith.constant 0 : index
    %c0_7 = arith.constant 0 : index
    %9 = vector.load %arg8[%c0_6, %c0_7] : memref<64x128xf32, #tpu.memory_space<vmem>>, vector<64x128xf32>
    tpu.vector_store %arg8[%c0_6, %c0_7], %8 {strides = array<i32>} : memref<64x128xf32, #tpu.memory_space<vmem>>, vector<64x128xf32>,
    %c0_8 = arith.constant 0 : index
    %c0_9 = arith.constant 0 : index
    %10 = vector.load %arg3[%c0_8, %c0_9] : memref<8x128xf32, #tpu.memory_space<vmem>>, vector<1x128xf32>
    %11 = vector.shape_cast %10 : vector<1x128xf32> to vector<1x128xf32>
    %12 = vector.broadcast %11 : vector<1x128xf32> to vector<8x128xf32>
    %c1 = arith.constant 1 : index
    %c0_10 = arith.constant 0 : index
    %13 = vector.load %arg3[%c1, %c0_10] : memref<8x128xf32, #tpu.memory_space<vmem>>, vector<1x128xf32>
    %14 = vector.shape_cast %13 : vector<1x128xf32> to vector<1x128xf32>
    %15 = vector.broadcast %14 : vector<1x128xf32> to vector<8x128xf32>
    %c2 = arith.constant 2 : index
    %c0_11 = arith.constant 0 : index
    %16 = vector.load %arg3[%c2, %c0_11] : memref<8x128xf32, #tpu.memory_space<vmem>>, vector<1x128xf32>
    %17 = vector.shape_cast %16 : vector<1x128xf32> to vector<1x128xf32>
    %18 = vector.broadcast %17 : vector<1x128xf32> to vector<8x128xf32>
    %c0_12 = arith.constant 0 : index
    %c0_13 = arith.constant 0 : index
    %19 = vector.load %arg9[%c0_12, %c0_13] : memref<8x32xf32, #tpu.memory_space<vmem>>, vector<8x32xf32>
    %c0_14 = arith.constant 0 : index
    %c0_15 = arith.constant 0 : index
    %20 = vector.load %arg10[%c0_14, %c0_15] : memref<8x32xf32, #tpu.memory_space<vmem>>, vector<8x32xf32>
    %21 = vector.extract_strided_slice %19 {offsets = [0, 0], sizes = [8, 1], strides = [1, 1]} : vector<8x32xf32> to vector<8x1xf32>
    %22 = vector.broadcast %21 : vector<8x1xf32> to vector<8x128xf32>
    %23 = arith.mulf %22, %12 : vector<8x128xf32>
    %24 = vector.extract_strided_slice %19 {offsets = [0, 1], sizes = [8, 1], strides = [1, 1]} : vector<8x32xf32> to vector<8x1xf32>
    %25 = vector.broadcast %24 : vector<8x1xf32> to vector<8x128xf32>
    %26 = arith.mulf %25, %15 : vector<8x128xf32>
    %27 = arith.addf %23, %26 : vector<8x128xf32>
    %28 = vector.extract_strided_slice %19 {offsets = [0, 2], sizes = [8, 1], strides = [1, 1]} : vector<8x32xf32> to vector<8x1xf32>
    %29 = vector.broadcast %28 : vector<8x1xf32> to vector<8x128xf32>
    %30 = arith.mulf %29, %18 : vector<8x128xf32>
    %31 = arith.addf %27, %30 : vector<8x128xf32>
    %c0_16 = arith.constant 0 : index
    %c0_17 = arith.constant 0 : index
    %32 = vector.load %arg8[%c0_16, %c0_17] : memref<64x128xf32, #tpu.memory_space<vmem>>, vector<8x128xf32>
    %33 = arith.addf %32, %31 : vector<8x128xf32>
    %34 = arith.negf %33 : vector<8x128xf32>
    %35 = math.exp %34 : vector<8x128xf32>
    %cst_18 = arith.constant 1.000000e+00 : f32
    %36 = vector.broadcast %cst_18 : f32 to vector<8x128xf32>
    %37 = arith.addf %36, %35 : vector<8x128xf32>
    %38 = arith.divf %36, %37 : vector<8x128xf32>
    %39 = vector.extract_strided_slice %38 {offsets = [0, 0], sizes = [8, 32], strides = [1, 1]} : vector<8x128xf32> to vector<8x32xf32>
    %40 = vector.extract_strided_slice %38 {offsets = [0, 32], sizes = [8, 32], strides = [1, 1]} : vector<8x128xf32> to vector<8x32xf32>
    %41 = vector.extract_strided_slice %38 {offsets = [0, 96], sizes = [8, 32], strides = [1, 1]} : vector<8x128xf32> to vector<8x32xf32>
    %42 = vector.extract_strided_slice %33 {offsets = [0, 64], sizes = [8, 32], strides = [1, 1]} : vector<8x128xf32> to vector<8x32xf32>
    %43 = math.tanh %42 : vector<8x32xf32>
    %44 = arith.mulf %40, %20 : vector<8x32xf32>
    %45 = arith.mulf %39, %43 : vector<8x32xf32>
    %46 = arith.addf %44, %45 : vector<8x32xf32>
    %47 = math.tanh %46 : vector<8x32xf32>
    %48 = arith.mulf %41, %47 : vector<8x32xf32>
    %49 = vector.extract_strided_slice %48 {offsets = [0, 0], sizes = [8, 1], strides = [1, 1]} : vector<8x32xf32> to vector<8x1xf32>
    %50 = vector.broadcast %49 : vector<8x1xf32> to vector<8x128xf32>
    %51 = arith.mulf %50, %12 : vector<8x128xf32>
    %52 = vector.extract_strided_slice %48 {offsets = [0, 1], sizes = [8, 1], strides = [1, 1]} : vector<8x32xf32> to vector<8x1xf32>
    %53 = vector.broadcast %52 : vector<8x1xf32> to vector<8x128xf32>
    %54 = arith.mulf %53, %15 : vector<8x128xf32>
    %55 = arith.addf %51, %54 : vector<8x128xf32>
    %56 = vector.extract_strided_slice %48 {offsets = [0, 2], sizes = [8, 1], strides = [1, 1]} : vector<8x32xf32> to vector<8x1xf32>
    %57 = vector.broadcast %56 : vector<8x1xf32> to vector<8x128xf32>
    %58 = arith.mulf %57, %18 : vector<8x128xf32>
    %59 = arith.addf %55, %58 : vector<8x128xf32>
    %c8 = arith.constant 8 : index
    %c0_19 = arith.constant 0 : index
    %60 = vector.load %arg8[%c8, %c0_19] : memref<64x128xf32, #tpu.memory_space<vmem>>, vector<8x128xf32>
    %61 = arith.addf %60, %59 : vector<8x128xf32>
    %62 = arith.negf %61 : vector<8x128xf32>
    %63 = math.exp %62 : vector<8x128xf32>
    %cst_20 = arith.constant 1.000000e+00 : f32
    %64 = vector.broadcast %cst_20 : f32 to vector<8x128xf32>
    %65 = arith.addf %64, %63 : vector<8x128xf32>
    %66 = arith.divf %64, %65 : vector<8x128xf32>
    %67 = vector.extract_strided_slice %66 {offsets = [0, 0], sizes = [8, 32], strides = [1, 1]} : vector<8x128xf32> to vector<8x32xf32>
    %68 = vector.extract_strided_slice %66 {offsets = [0, 32], sizes = [8, 32], strides = [1, 1]} : vector<8x128xf32> to vector<8x32xf32>
    %69 = vector.extract_strided_slice %66 {offsets = [0, 96], sizes = [8, 32], strides = [1, 1]} : vector<8x128xf32> to vector<8x32xf32>
    %70 = vector.extract_strided_slice %61 {offsets = [0, 64], sizes = [8, 32], strides = [1, 1]} : vector<8x128xf32> to vector<8x32xf32>
    %71 = math.tanh %70 : vector<8x32xf32>
    %72 = arith.mulf %68, %46 : vector<8x32xf32>
    %73 = arith.mulf %67, %71 : vector<8x32xf32>
    %74 = arith.addf %72, %73 : vector<8x32xf32>
    %75 = math.tanh %74 : vector<8x32xf32>
    %76 = arith.mulf %69, %75 : vector<8x32xf32>
    %77 = vector.extract_strided_slice %76 {offsets = [0, 0], sizes = [8, 1], strides = [1, 1]} : vector<8x32xf32> to vector<8x1xf32>
    %78 = vector.broadcast %77 : vector<8x1xf32> to vector<8x128xf32>
    %79 = arith.mulf %78, %12 : vector<8x128xf32>
    %80 = vector.extract_strided_slice %76 {offsets = [0, 1], sizes = [8, 1], strides = [1, 1]} : vector<8x32xf32> to vector<8x1xf32>
    %81 = vector.broadcast %80 : vector<8x1xf32> to vector<8x128xf32>
    %82 = arith.mulf %81, %15 : vector<8x128xf32>
    %83 = arith.addf %79, %82 : vector<8x128xf32>
    %84 = vector.extract_strided_slice %76 {offsets = [0, 2], sizes = [8, 1], strides = [1, 1]} : vector<8x32xf32> to vector<8x1xf32>
    %85 = vector.broadcast %84 : vector<8x1xf32> to vector<8x128xf32>
    %86 = arith.mulf %85, %18 : vector<8x128xf32>
    %87 = arith.addf %83, %86 : vector<8x128xf32>
    %c16 = arith.constant 16 : index
    %c0_21 = arith.constant 0 : index
    %88 = vector.load %arg8[%c16, %c0_21] : memref<64x128xf32, #tpu.memory_space<vmem>>, vector<8x128xf32>
    %89 = arith.addf %88, %87 : vector<8x128xf32>
    %90 = arith.negf %89 : vector<8x128xf32>
    %91 = math.exp %90 : vector<8x128xf32>
    %cst_22 = arith.constant 1.000000e+00 : f32
    %92 = vector.broadcast %cst_22 : f32 to vector<8x128xf32>
    %93 = arith.addf %92, %91 : vector<8x128xf32>
    %94 = arith.divf %92, %93 : vector<8x128xf32>
    %95 = vector.extract_strided_slice %94 {offsets = [0, 0], sizes = [8, 32], strides = [1, 1]} : vector<8x128xf32> to vector<8x32xf32>
    %96 = vector.extract_strided_slice %94 {offsets = [0, 32], sizes = [8, 32], strides = [1, 1]} : vector<8x128xf32> to vector<8x32xf32>
    %97 = vector.extract_strided_slice %94 {offsets = [0, 96], sizes = [8, 32], strides = [1, 1]} : vector<8x128xf32> to vector<8x32xf32>
    %98 = vector.extract_strided_slice %89 {offsets = [0, 64], sizes = [8, 32], strides = [1, 1]} : vector<8x128xf32> to vector<8x32xf32>
    %99 = math.tanh %98 : vector<8x32xf32>
    %100 = arith.mulf %96, %74 : vector<8x32xf32>
    %101 = arith.mulf %95, %99 : vector<8x32xf32>
    %102 = arith.addf %100, %101 : vector<8x32xf32>
    %103 = math.tanh %102 : vector<8x32xf32>
    %104 = arith.mulf %97, %103 : vector<8x32xf32>
    %105 = vector.extract_strided_slice %104 {offsets = [0, 0], sizes = [8, 1], strides = [1, 1]} : vector<8x32xf32> to vector<8x1xf32>
    %106 = vector.broadcast %105 : vector<8x1xf32> to vector<8x128xf32>
    %107 = arith.mulf %106, %12 : vector<8x128xf32>
    %108 = vector.extract_strided_slice %104 {offsets = [0, 1], sizes = [8, 1], strides = [1, 1]} : vector<8x32xf32> to vector<8x1xf32>
    %109 = vector.broadcast %108 : vector<8x1xf32> to vector<8x128xf32>
    %110 = arith.mulf %109, %15 : vector<8x128xf32>
    %111 = arith.addf %107, %110 : vector<8x128xf32>
    %112 = vector.extract_strided_slice %104 {offsets = [0, 2], sizes = [8, 1], strides = [1, 1]} : vector<8x32xf32> to vector<8x1xf32>
    %113 = vector.broadcast %112 : vector<8x1xf32> to vector<8x128xf32>
    %114 = arith.mulf %113, %18 : vector<8x128xf32>
    %115 = arith.addf %111, %114 : vector<8x128xf32>
    %c24 = arith.constant 24 : index
    %c0_23 = arith.constant 0 : index
    %116 = vector.load %arg8[%c24, %c0_23] : memref<64x128xf32, #tpu.memory_space<vmem>>, vector<8x128xf32>
    %117 = arith.addf %116, %115 : vector<8x128xf32>
    %118 = arith.negf %117 : vector<8x128xf32>
    %119 = math.exp %118 : vector<8x128xf32>
    %cst_24 = arith.constant 1.000000e+00 : f32
    %120 = vector.broadcast %cst_24 : f32 to vector<8x128xf32>
    %121 = arith.addf %120, %119 : vector<8x128xf32>
    %122 = arith.divf %120, %121 : vector<8x128xf32>
    %123 = vector.extract_strided_slice %122 {offsets = [0, 0], sizes = [8, 32], strides = [1, 1]} : vector<8x128xf32> to vector<8x32xf32>
    %124 = vector.extract_strided_slice %122 {offsets = [0, 32], sizes = [8, 32], strides = [1, 1]} : vector<8x128xf32> to vector<8x32xf32>
    %125 = vector.extract_strided_slice %122 {offsets = [0, 96], sizes = [8, 32], strides = [1, 1]} : vector<8x128xf32> to vector<8x32xf32>
    %126 = vector.extract_strided_slice %117 {offsets = [0, 64], sizes = [8, 32], strides = [1, 1]} : vector<8x128xf32> to vector<8x32xf32>
    %127 = math.tanh %126 : vector<8x32xf32>
    %128 = arith.mulf %124, %102 : vector<8x32xf32>
    %129 = arith.mulf %123, %127 : vector<8x32xf32>
    %130 = arith.addf %128, %129 : vector<8x32xf32>
    %131 = math.tanh %130 : vector<8x32xf32>
    %132 = arith.mulf %125, %131 : vector<8x32xf32>
    %133 = vector.extract_strided_slice %132 {offsets = [0, 0], sizes = [8, 1], strides = [1, 1]} : vector<8x32xf32> to vector<8x1xf32>
    %134 = vector.broadcast %133 : vector<8x1xf32> to vector<8x128xf32>
    %135 = arith.mulf %134, %12 : vector<8x128xf32>
    %136 = vector.extract_strided_slice %132 {offsets = [0, 1], sizes = [8, 1], strides = [1, 1]} : vector<8x32xf32> to vector<8x1xf32>
    %137 = vector.broadcast %136 : vector<8x1xf32> to vector<8x128xf32>
    %138 = arith.mulf %137, %15 : vector<8x128xf32>
    %139 = arith.addf %135, %138 : vector<8x128xf32>
    %140 = vector.extract_strided_slice %132 {offsets = [0, 2], sizes = [8, 1], strides = [1, 1]} : vector<8x32xf32> to vector<8x1xf32>
    %141 = vector.broadcast %140 : vector<8x1xf32> to vector<8x128xf32>
    %142 = arith.mulf %141, %18 : vector<8x128xf32>
    %143 = arith.addf %139, %142 : vector<8x128xf32>
    %c32 = arith.constant 32 : index
    %c0_25 = arith.constant 0 : index
    %144 = vector.load %arg8[%c32, %c0_25] : memref<64x128xf32, #tpu.memory_space<vmem>>, vector<8x128xf32>
    %145 = arith.addf %144, %143 : vector<8x128xf32>
    %146 = arith.negf %145 : vector<8x128xf32>
    %147 = math.exp %146 : vector<8x128xf32>
    %cst_26 = arith.constant 1.000000e+00 : f32
    %148 = vector.broadcast %cst_26 : f32 to vector<8x128xf32>
    %149 = arith.addf %148, %147 : vector<8x128xf32>
    %150 = arith.divf %148, %149 : vector<8x128xf32>
    %151 = vector.extract_strided_slice %150 {offsets = [0, 0], sizes = [8, 32], strides = [1, 1]} : vector<8x128xf32> to vector<8x32xf32>
    %152 = vector.extract_strided_slice %150 {offsets = [0, 32], sizes = [8, 32], strides = [1, 1]} : vector<8x128xf32> to vector<8x32xf32>
    %153 = vector.extract_strided_slice %150 {offsets = [0, 96], sizes = [8, 32], strides = [1, 1]} : vector<8x128xf32> to vector<8x32xf32>
    %154 = vector.extract_strided_slice %145 {offsets = [0, 64], sizes = [8, 32], strides = [1, 1]} : vector<8x128xf32> to vector<8x32xf32>
    %155 = math.tanh %154 : vector<8x32xf32>
    %156 = arith.mulf %152, %130 : vector<8x32xf32>
    %157 = arith.mulf %151, %155 : vector<8x32xf32>
    %158 = arith.addf %156, %157 : vector<8x32xf32>
    %159 = math.tanh %158 : vector<8x32xf32>
    %160 = arith.mulf %153, %159 : vector<8x32xf32>
    %161 = vector.extract_strided_slice %160 {offsets = [0, 0], sizes = [8, 1], strides = [1, 1]} : vector<8x32xf32> to vector<8x1xf32>
    %162 = vector.broadcast %161 : vector<8x1xf32> to vector<8x128xf32>
    %163 = arith.mulf %162, %12 : vector<8x128xf32>
    %164 = vector.extract_strided_slice %160 {offsets = [0, 1], sizes = [8, 1], strides = [1, 1]} : vector<8x32xf32> to vector<8x1xf32>
    %165 = vector.broadcast %164 : vector<8x1xf32> to vector<8x128xf32>
    %166 = arith.mulf %165, %15 : vector<8x128xf32>
    %167 = arith.addf %163, %166 : vector<8x128xf32>
    %168 = vector.extract_strided_slice %160 {offsets = [0, 2], sizes = [8, 1], strides = [1, 1]} : vector<8x32xf32> to vector<8x1xf32>
    %169 = vector.broadcast %168 : vector<8x1xf32> to vector<8x128xf32>
    %170 = arith.mulf %169, %18 : vector<8x128xf32>
    %171 = arith.addf %167, %170 : vector<8x128xf32>
    %c40 = arith.constant 40 : index
    %c0_27 = arith.constant 0 : index
    %172 = vector.load %arg8[%c40, %c0_27] : memref<64x128xf32, #tpu.memory_space<vmem>>, vector<8x128xf32>
    %173 = arith.addf %172, %171 : vector<8x128xf32>
    %174 = arith.negf %173 : vector<8x128xf32>
    %175 = math.exp %174 : vector<8x128xf32>
    %cst_28 = arith.constant 1.000000e+00 : f32
    %176 = vector.broadcast %cst_28 : f32 to vector<8x128xf32>
    %177 = arith.addf %176, %175 : vector<8x128xf32>
    %178 = arith.divf %176, %177 : vector<8x128xf32>
    %179 = vector.extract_strided_slice %178 {offsets = [0, 0], sizes = [8, 32], strides = [1, 1]} : vector<8x128xf32> to vector<8x32xf32>
    %180 = vector.extract_strided_slice %178 {offsets = [0, 32], sizes = [8, 32], strides = [1, 1]} : vector<8x128xf32> to vector<8x32xf32>
    %181 = vector.extract_strided_slice %178 {offsets = [0, 96], sizes = [8, 32], strides = [1, 1]} : vector<8x128xf32> to vector<8x32xf32>
    %182 = vector.extract_strided_slice %173 {offsets = [0, 64], sizes = [8, 32], strides = [1, 1]} : vector<8x128xf32> to vector<8x32xf32>
    %183 = math.tanh %182 : vector<8x32xf32>
    %184 = arith.mulf %180, %158 : vector<8x32xf32>
    %185 = arith.mulf %179, %183 : vector<8x32xf32>
    %186 = arith.addf %184, %185 : vector<8x32xf32>
    %187 = math.tanh %186 : vector<8x32xf32>
    %188 = arith.mulf %181, %187 : vector<8x32xf32>
    %189 = vector.extract_strided_slice %188 {offsets = [0, 0], sizes = [8, 1], strides = [1, 1]} : vector<8x32xf32> to vector<8x1xf32>
    %190 = vector.broadcast %189 : vector<8x1xf32> to vector<8x128xf32>
    %191 = arith.mulf %190, %12 : vector<8x128xf32>
    %192 = vector.extract_strided_slice %188 {offsets = [0, 1], sizes = [8, 1], strides = [1, 1]} : vector<8x32xf32> to vector<8x1xf32>
    %193 = vector.broadcast %192 : vector<8x1xf32> to vector<8x128xf32>
    %194 = arith.mulf %193, %15 : vector<8x128xf32>
    %195 = arith.addf %191, %194 : vector<8x128xf32>
    %196 = vector.extract_strided_slice %188 {offsets = [0, 2], sizes = [8, 1], strides = [1, 1]} : vector<8x32xf32> to vector<8x1xf32>
    %197 = vector.broadcast %196 : vector<8x1xf32> to vector<8x128xf32>
    %198 = arith.mulf %197, %18 : vector<8x128xf32>
    %199 = arith.addf %195, %198 : vector<8x128xf32>
    %c48 = arith.constant 48 : index
    %c0_29 = arith.constant 0 : index
    %200 = vector.load %arg8[%c48, %c0_29] : memref<64x128xf32, #tpu.memory_space<vmem>>, vector<8x128xf32>
    %201 = arith.addf %200, %199 : vector<8x128xf32>
    %202 = arith.negf %201 : vector<8x128xf32>
    %203 = math.exp %202 : vector<8x128xf32>
    %cst_30 = arith.constant 1.000000e+00 : f32
    %204 = vector.broadcast %cst_30 : f32 to vector<8x128xf32>
    %205 = arith.addf %204, %203 : vector<8x128xf32>
    %206 = arith.divf %204, %205 : vector<8x128xf32>
    %207 = vector.extract_strided_slice %206 {offsets = [0, 0], sizes = [8, 32], strides = [1, 1]} : vector<8x128xf32> to vector<8x32xf32>
    %208 = vector.extract_strided_slice %206 {offsets = [0, 32], sizes = [8, 32], strides = [1, 1]} : vector<8x128xf32> to vector<8x32xf32>
    %209 = vector.extract_strided_slice %206 {offsets = [0, 96], sizes = [8, 32], strides = [1, 1]} : vector<8x128xf32> to vector<8x32xf32>
    %210 = vector.extract_strided_slice %201 {offsets = [0, 64], sizes = [8, 32], strides = [1, 1]} : vector<8x128xf32> to vector<8x32xf32>
    %211 = math.tanh %210 : vector<8x32xf32>
    %212 = arith.mulf %208, %186 : vector<8x32xf32>
    %213 = arith.mulf %207, %211 : vector<8x32xf32>
    %214 = arith.addf %212, %213 : vector<8x32xf32>
    %215 = math.tanh %214 : vector<8x32xf32>
    %216 = arith.mulf %209, %215 : vector<8x32xf32>
    %217 = vector.extract_strided_slice %216 {offsets = [0, 0], sizes = [8, 1], strides = [1, 1]} : vector<8x32xf32> to vector<8x1xf32>
    %218 = vector.broadcast %217 : vector<8x1xf32> to vector<8x128xf32>
    %219 = arith.mulf %218, %12 : vector<8x128xf32>
    %220 = vector.extract_strided_slice %216 {offsets = [0, 1], sizes = [8, 1], strides = [1, 1]} : vector<8x32xf32> to vector<8x1xf32>
    %221 = vector.broadcast %220 : vector<8x1xf32> to vector<8x128xf32>
    %222 = arith.mulf %221, %15 : vector<8x128xf32>
    %223 = arith.addf %219, %222 : vector<8x128xf32>
    %224 = vector.extract_strided_slice %216 {offsets = [0, 2], sizes = [8, 1], strides = [1, 1]} : vector<8x32xf32> to vector<8x1xf32>
    %225 = vector.broadcast %224 : vector<8x1xf32> to vector<8x128xf32>
    %226 = arith.mulf %225, %18 : vector<8x128xf32>
    %227 = arith.addf %223, %226 : vector<8x128xf32>
    %c56 = arith.constant 56 : index
    %c0_31 = arith.constant 0 : index
    %228 = vector.load %arg8[%c56, %c0_31] : memref<64x128xf32, #tpu.memory_space<vmem>>, vector<8x128xf32>
    %229 = arith.addf %228, %227 : vector<8x128xf32>
    %230 = arith.negf %229 : vector<8x128xf32>
    %231 = math.exp %230 : vector<8x128xf32>
    %cst_32 = arith.constant 1.000000e+00 : f32
    %232 = vector.broadcast %cst_32 : f32 to vector<8x128xf32>
    %233 = arith.addf %232, %231 : vector<8x128xf32>
    %234 = arith.divf %232, %233 : vector<8x128xf32>
    %235 = vector.extract_strided_slice %234 {offsets = [0, 0], sizes = [8, 32], strides = [1, 1]} : vector<8x128xf32> to vector<8x32xf32>
    %236 = vector.extract_strided_slice %234 {offsets = [0, 32], sizes = [8, 32], strides = [1, 1]} : vector<8x128xf32> to vector<8x32xf32>
    %237 = vector.extract_strided_slice %234 {offsets = [0, 96], sizes = [8, 32], strides = [1, 1]} : vector<8x128xf32> to vector<8x32xf32>
    %238 = vector.extract_strided_slice %229 {offsets = [0, 64], sizes = [8, 32], strides = [1, 1]} : vector<8x128xf32> to vector<8x32xf32>
    %239 = math.tanh %238 : vector<8x32xf32>
    %240 = arith.mulf %236, %214 : vector<8x32xf32>
    %241 = arith.mulf %235, %239 : vector<8x32xf32>
    %242 = arith.addf %240, %241 : vector<8x32xf32>
    %243 = math.tanh %242 : vector<8x32xf32>
    %244 = arith.mulf %237, %243 : vector<8x32xf32>
    %c0_33 = arith.constant 0 : index
    %c0_34 = arith.constant 0 : index
    %245 = vector.load %arg9[%c0_33, %c0_34] : memref<8x32xf32, #tpu.memory_space<vmem>>, vector<8x32xf32>
    tpu.vector_store %arg9[%c0_33, %c0_34], %244 {strides = array<i32>} : memref<8x32xf32, #tpu.memory_space<vmem>>, vector<8x32xf32>,
    %c0_35 = arith.constant 0 : index
    %c0_36 = arith.constant 0 : index
    %246 = vector.load %arg10[%c0_35, %c0_36] : memref<8x32xf32, #tpu.memory_space<vmem>>, vector<8x32xf32>
    tpu.vector_store %arg10[%c0_35, %c0_36], %242 {strides = array<i32>} : memref<8x32xf32, #tpu.memory_space<vmem>>, vector<8x32xf32>,
    %c0_i32_37 = arith.constant 0 : i32
    %247 = arith.cmpi eq, %arg0, %c0_i32_37 : i32
    %248 = arith.extui %247 : i1 to i32
    %c0_i32_38 = arith.constant 0 : i32
    %249 = arith.cmpi ne, %248, %c0_i32_38 : i32
    scf.if %249 {
      %c0_39 = arith.constant 0 : index
      %c0_40 = arith.constant 0 : index
      %250 = vector.load %arg6[%c0_39, %c0_40] : memref<1x128xf32, #tpu.memory_space<vmem>>, vector<1x128xf32>
      %251 = vector.shape_cast %250 : vector<1x128xf32> to vector<1x128xf32>
      %252 = vector.broadcast %251 : vector<1x128xf32> to vector<8x128xf32>
      %253 = vector.extract_strided_slice %244 {offsets = [0, 0], sizes = [8, 1], strides = [1, 1]} : vector<8x32xf32> to vector<8x1xf32>
      %c0_41 = arith.constant 0 : index
      %c0_42 = arith.constant 0 : index
      %254 = vector.load %arg5[%c0_41, %c0_42] : memref<8x128xf32, #tpu.memory_space<vmem>>, vector<1x128xf32>
      %255 = vector.shape_cast %254 : vector<1x128xf32> to vector<1x128xf32>
      %256 = vector.broadcast %255 : vector<1x128xf32> to vector<8x128xf32>
      %257 = vector.broadcast %253 : vector<8x1xf32> to vector<8x128xf32>
      %258 = arith.mulf %257, %256 : vector<8x128xf32>
      %259 = arith.addf %252, %258 : vector<8x128xf32>
      %260 = vector.extract_strided_slice %244 {offsets = [0, 1], sizes = [8, 1], strides = [1, 1]} : vector<8x32xf32> to vector<8x1xf32>
      %c1_43 = arith.constant 1 : index
      %c0_44 = arith.constant 0 : index
      %261 = vector.load %arg5[%c1_43, %c0_44] : memref<8x128xf32, #tpu.memory_space<vmem>>, vector<1x128xf32>
      %262 = vector.shape_cast %261 : vector<1x128xf32> to vector<1x128xf32>
      %263 = vector.broadcast %262 : vector<1x128xf32> to vector<8x128xf32>
      %264 = vector.broadcast %260 : vector<8x1xf32> to vector<8x128xf32>
      %265 = arith.mulf %264, %263 : vector<8x128xf32>
      %266 = arith.addf %259, %265 : vector<8x128xf32>
      %267 = vector.extract_strided_slice %244 {offsets = [0, 2], sizes = [8, 1], strides = [1, 1]} : vector<8x32xf32> to vector<8x1xf32>
      %c2_45 = arith.constant 2 : index
      %c0_46 = arith.constant 0 : index
      %268 = vector.load %arg5[%c2_45, %c0_46] : memref<8x128xf32, #tpu.memory_space<vmem>>, vector<1x128xf32>
      %269 = vector.shape_cast %268 : vector<1x128xf32> to vector<1x128xf32>
      %270 = vector.broadcast %269 : vector<1x128xf32> to vector<8x128xf32>
      %271 = vector.broadcast %267 : vector<8x1xf32> to vector<8x128xf32>
      %272 = arith.mulf %271, %270 : vector<8x128xf32>
      %273 = arith.addf %266, %272 : vector<8x128xf32>
      %c0_47 = arith.constant 0 : index
      %c0_48 = arith.constant 0 : index
      %274 = vector.load %arg7[%c0_47, %c0_48] : memref<8x128xf32, #tpu.memory_space<vmem>>, vector<8x128xf32>
      tpu.vector_store %arg7[%c0_47, %c0_48], %273 {strides = array<i32>} : memref<8x128xf32, #tpu.memory_space<vmem>>, vector<8x128xf32>,
    } else {
    }
    return
  }
  func.func @transform_0(%arg0: i32) -> (i32, i32) {
    %c0_i32 = arith.constant 0 : i32
    %c0_i32_0 = arith.constant 0 : i32
    return %arg0, %c0_i32 : i32, i32
  }
  func.func @transform_1(%arg0: i32) -> (i32, i32) {
    %c0_i32 = arith.constant 0 : i32
    %c0_i32_0 = arith.constant 0 : i32
    %c0_i32_1 = arith.constant 0 : i32
    return %c0_i32, %c0_i32_0 : i32, i32
  }
  func.func @transform_2(%arg0: i32) -> (i32, i32) {
    %c0_i32 = arith.constant 0 : i32
    %c0_i32_0 = arith.constant 0 : i32
    %c0_i32_1 = arith.constant 0 : i32
    return %c0_i32, %c0_i32_0 : i32, i32
  }
  func.func @transform_3(%arg0: i32) -> (i32, i32) {
    %c0_i32 = arith.constant 0 : i32
    %c0_i32_0 = arith.constant 0 : i32
    %c0_i32_1 = arith.constant 0 : i32
    return %c0_i32, %c0_i32_0 : i32, i32
  }
  func.func @transform_4(%arg0: i32) -> (i32, i32) {
    %c0_i32 = arith.constant 0 : i32
    %c0_i32_0 = arith.constant 0 : i32
    %c0_i32_1 = arith.constant 0 : i32
    return %c0_i32, %c0_i32_0 : i32, i32
  }
  func.func @transform_5(%arg0: i32) -> (i32, i32) {
    %c0_i32 = arith.constant 0 : i32
    %c0_i32_0 = arith.constant 0 : i32
    %c0_i32_1 = arith.constant 0 : i32
    return %c0_i32, %c0_i32_0 : i32, i32
  }
  func.func @transform_6(%arg0: i32) -> (i32, i32) {
    %c0_i32 = arith.constant 0 : i32
    %c0_i32_0 = arith.constant 0 : i32
    %c0_i32_1 = arith.constant 0 : i32
    return %c0_i32, %c0_i32_0 : i32, i32
  }
}

</mosaic_0001>

<llo_original>
// kernel: energy_lstm_forward.1
$region0: #{energy_lstm_forward.1}
  #allocation0 [shape = 'u32[]', space=smem, size = 0x4, offset = 0x4, fixed_abs, tag = 'smem constant byte address 0x4 - core index']
  #allocation1 [shape = 'u32[144,128]{1,0:T(1,128)}', space=vmem, size = 0x12000, scoped, tag = 'internal scratch']
  #allocation2 [shape = 'f32[64,128]{1,0:T(8,128)}', space=vmem, size = 0x8000, scoped, tag = 'scratch operand']
  #allocation3 [shape = 'f32[8,32]{1,0:T(8,128)}', space=vmem, size = 0x1000, scoped, tag = 'scratch operand']
  #allocation4 [shape = 'f32[8,32]{1,0:T(8,128)}', space=vmem, size = 0x1000, scoped, tag = 'scratch operand']
  %s0 = inlined_call_operand.vmem [shape: f32[64,8], index: 0, kind: input, shape index: {}]
  %s1 = inlined_call_operand.vmem [shape: f32[8,128], index: 1, kind: input, shape index: {}]
  %s2 = inlined_call_operand.vmem [shape: f32[8,128], index: 2, kind: input, shape index: {}]
  %s3 = inlined_call_operand.vmem [shape: f32[1,128], index: 3, kind: input, shape index: {}]
  %s4 = inlined_call_operand.vmem [shape: f32[8,128], index: 4, kind: input, shape index: {}]
  %s5 = inlined_call_operand.vmem [shape: f32[1,128], index: 5, kind: input, shape index: {}]
  %s6 = inlined_call_operand.vmem [shape: f32[8,128], index: 6, kind: output, shape index: {}]
  %s7 = sld [smem:[#allocation0]]
  $region42: #{energy_lstm_forward.1} parent=0
    _
  %s9 = ssub.s32 1, %s7
  %s10 = scalar_select 0, %s9, %s7
  // Predicated region
  $region2: #{energy_lstm_forward.1} parent=0 // pred_check
    _
  $region3: #{energy_lstm_forward.1} parent=0 // pred_check_branch
    %12 = sbr.rel (0) target = $region5
  $region4: #{energy_lstm_forward.1} parent=0 // pred_region
    _
  $region5: #{energy_lstm_forward.1} parent=0 // pred_fallthru
    _
  // Predicated region
  $region6: #{energy_lstm_forward.1} parent=0 // pred_check
    _
  $region7: #{energy_lstm_forward.1} parent=0 // pred_check_branch
    %14 = sbr.rel (0) target = $region9
  $region8: #{energy_lstm_forward.1} parent=0 // pred_region
    _
  $region9: #{energy_lstm_forward.1} parent=0 // pred_fallthru
    _
  // Predicated region
  $region10: #{energy_lstm_forward.1} parent=0 // pred_check
    _
  $region11: #{energy_lstm_forward.1} parent=0 // pred_check_branch
    %16 = sbr.rel (0) target = $region13
  $region12: #{energy_lstm_forward.1} parent=0 // pred_region
    _
  $region13: #{energy_lstm_forward.1} parent=0 // pred_fallthru
    _
  // Predicated region
  $region14: #{energy_lstm_forward.1} parent=0 // pred_check
    _
  $region15: #{energy_lstm_forward.1} parent=0 // pred_check_branch
    %18 = sbr.rel (0) target = $region17
  $region16: #{energy_lstm_forward.1} parent=0 // pred_region
    _
  $region17: #{energy_lstm_forward.1} parent=0 // pred_fallthru
    _
  // Predicated region
  $region18: #{energy_lstm_forward.1} parent=0 // pred_check
    _
  $region19: #{energy_lstm_forward.1} parent=0 // pred_check_branch
    %20 = sbr.rel (0) target = $region21
  $region20: #{energy_lstm_forward.1} parent=0 // pred_region
    _
  $region21: #{energy_lstm_forward.1} parent=0 // pred_fallthru
    _
  // Predicated region
  $region22: #{energy_lstm_forward.1} parent=0 // pred_check
    _
  $region23: #{energy_lstm_forward.1} parent=0 // pred_check_branch
    %22 = sbr.rel (0) target = $region25
  $region24: #{energy_lstm_forward.1} parent=0 // pred_region
    _
  $region25: #{energy_lstm_forward.1} parent=0 // pred_fallthru
    _
  %p23 = scmp.eq.s32.totalorder 0, 0
  // Predicated region
  $region26: #{energy_lstm_forward.1} parent=0 // pred_check
    %p24 = pneg %p23
  $region27: #{energy_lstm_forward.1} parent=0 // pred_check_branch
    %26 = sbr.rel (%p24) target = $region29
  $region28: #{energy_lstm_forward.1} parent=0 // pred_region
    %vm27 = vcmask 261120
    %28 = vst.msk [vmem:[#allocation3] sm:$0xff] %vm27, 0.0
    %29 = vst.msk [vmem:[#allocation4] sm:$0xff] %vm27, 0.0
  $region29: #{energy_lstm_forward.1} parent=0 // pred_fallthru
    _
  %v30 = vld [vmem:[%s0] sm:$0xff]
  %v31 = vld [vmem:[%s0 + $0x8] sm:$0xff]
  %v32 = vld [vmem:[%s0 + $0x10] sm:$0xff]
  %v33 = vld [vmem:[%s0 + $0x18] sm:$0xff]
  %v34 = vld [vmem:[%s0 + $0x20] sm:$0xff]
  %v35 = vld [vmem:[%s0 + $0x28] sm:$0xff]
  %v36 = vld [vmem:[%s0 + $0x30] sm:$0xff]
  %v37 = vld [vmem:[%s0 + $0x38] sm:$0xff]
  %v38 = vld [vmem:[%s1] sm:$0xff]
  %v39 = vld [vmem:[%s3] sm:$0x1]
  %v41 = vlaneseq
  %v42 = vshrl.u32 %v41, 7
  %v43 = vsub.s32 0, %v42
  %v44 = vrot.slane %v39, %v43
  %vm46 = vcmask 64512
  %v48 = vsel %vm46, %v30, 0
  %v51 = vsel %vm46, %v31, 0
  %v54 = vsel %vm46, %v32, 0
  %v57 = vsel %vm46, %v33, 0
  %v60 = vsel %vm46, %v34, 0
  %v63 = vsel %vm46, %v35, 0
  %v66 = vsel %vm46, %v36, 0
  %v69 = vsel %vm46, %v37, 0
  %71 = vmatprep.subr.mxu0 0.0
  %72 = vmatpush1.msra.mxu0 0.0
  %73 = vmatprep.subr.mxu0 0.0
  %74 = vmatpush1.msra.mxu0 0.0
  %75 = vmatprep.subr.mxu0 0.0
  %76 = vmatpush1.msra.mxu0 0.0
  %77 = vmatprep.subr.mxu0 0.0
  %78 = vmatpush1.msra.mxu0 0.0
  %79 = vmatprep.subr.mxu0 0.0
  %80 = vmatpush1.msra.mxu0 0.0
  %81 = vmatprep.subr.mxu0 0.0
  %82 = vmatpush1.msra.mxu0 0.0
  %83 = vmatprep.subr.mxu0 0.0
  %84 = vmatpush1.msra.mxu0 0.0
  %85 = vmatprep.subr.mxu0 0.0
  %86 = vmatpush1.msra.mxu0 0.0
  %87 = vmatprep.subr.mxu0 0.0
  %88 = vmatpush1.msra.mxu0 0.0
  %89 = vmatprep.subr.mxu0 0.0
  %90 = vmatpush1.msra.mxu0 0.0
  %91 = vmatprep.subr.mxu0 0.0
  %92 = vmatpush1.msra.mxu0 0.0
  %93 = vmatprep.subr.mxu0 0.0
  %94 = vmatpush1.msra.mxu0 0.0
  %95 = vmatprep.subr.mxu0 0.0
  %96 = vmatpush1.msra.mxu0 0.0
  %97 = vmatprep.subr.mxu0 0.0
  %98 = vmatpush1.msra.mxu0 0.0
  %99 = vmatprep.subr.mxu0 0.0
  %100 = vmatpush1.msra.mxu0 0.0
  %101 = vmatprep.subr.mxu0 0.0
  %102 = vmatpush1.msra.mxu0 %v38
  %103 = vmatprep.subr.mxu0 0.0
  %104 = vmatpush2.msra.mxu0 0.0
  %105 = vmatprep.subr.mxu0 0.0
  %106 = vmatpush2.msra.mxu0 0.0
  %107 = vmatprep.subr.mxu0 0.0
  %108 = vmatpush2.msra.mxu0 0.0
  %109 = vmatprep.subr.mxu0 0.0
  %110 = vmatpush2.msra.mxu0 0.0
  %111 = vmatprep.subr.mxu0 0.0
  %112 = vmatpush2.msra.mxu0 0.0
  %113 = vmatprep.subr.mxu0 0.0
  %114 = vmatpush2.msra.mxu0 0.0
  %115 = vmatprep.subr.mxu0 0.0
  %116 = vmatpush2.msra.mxu0 0.0
  %117 = vmatprep.subr.mxu0 0.0
  %118 = vmatpush2.msra.mxu0 0.0
  %119 = vmatprep.subr.mxu0 0.0
  %120 = vmatpush2.msra.mxu0 0.0
  %121 = vmatprep.subr.mxu0 0.0
  %122 = vmatpush2.msra.mxu0 0.0
  %123 = vmatprep.subr.mxu0 0.0
  %124 = vmatpush2.msra.mxu0 0.0
  %125 = vmatprep.subr.mxu0 0.0
  %126 = vmatpush2.msra.mxu0 0.0
  %127 = vmatprep.subr.mxu0 0.0
  %128 = vmatpush2.msra.mxu0 0.0
  %129 = vmatprep.subr.mxu0 0.0
  %130 = vmatpush2.msra.mxu0 0.0
  %131 = vmatprep.subr.mxu0 0.0
  %132 = vmatpush2.msra.mxu0 0.0
  %133 = vmatprep.subr.mxu0 0.0
  %134 = vmatpush2.msra.mxu0 0.0
  %135 = vmatprep.mubr.f32.mxu0 0.0
  %136 = vmatmul.mubr.f32.gmra.mxu0 %v48
  %v137 = vpop.f32.mrf.mxu0
  %v138 = vadd.f32 %v44, %v137
  %v139 = vpop.f32.mrf.mxu0
  %140 = vmatprep.mubr.f32.mxu0 0.0
  %141 = vmatmul.mubr.f32.gmra.mxu0 %v51
  %v142 = vpop.f32.mrf.mxu0
  %v143 = vadd.f32 %v44, %v142
  %v144 = vpop.f32.mrf.mxu0
  %145 = vmatprep.mubr.f32.mxu0 0.0
  %146 = vmatmul.mubr.f32.gmra.mxu0 %v54
  %v147 = vpop.f32.mrf.mxu0
  %v148 = vadd.f32 %v44, %v147
  %v149 = vpop.f32.mrf.mxu0
  %150 = vmatprep.mubr.f32.mxu0 0.0
  %151 = vmatmul.mubr.f32.gmra.mxu0 %v57
  %v152 = vpop.f32.mrf.mxu0
  %v153 = vadd.f32 %v44, %v152
  %v154 = vpop.f32.mrf.mxu0
  %155 = vmatprep.mubr.f32.mxu0 0.0
  %156 = vmatmul.mubr.f32.gmra.mxu0 %v60
  %v157 = vpop.f32.mrf.mxu0
  %v158 = vadd.f32 %v44, %v157
  %v159 = vpop.f32.mrf.mxu0
  %160 = vmatprep.mubr.f32.mxu0 0.0
  %161 = vmatmul.mubr.f32.gmra.mxu0 %v63
  %v162 = vpop.f32.mrf.mxu0
  %v163 = vadd.f32 %v44, %v162
  %v164 = vpop.f32.mrf.mxu0
  %165 = vmatprep.mubr.f32.mxu0 0.0
  %166 = vmatmul.mubr.f32.gmra.mxu0 %v66
  %v167 = vpop.f32.mrf.mxu0
  %v168 = vadd.f32 %v44, %v167
  %v169 = vpop.f32.mrf.mxu0
  %170 = vmatprep.mubr.f32.mxu0 0.0
  %171 = vmatmul.mubr.f32.gmra.mxu0 %v69
  %v172 = vpop.f32.mrf.mxu0
  %v173 = vadd.f32 %v44, %v172
  %v174 = vpop.f32.mrf.mxu0
  %175 = vdwg.mxu0
  %176 = vst [vmem:[#allocation2] sm:$0xff] %v138
  %177 = vst [vmem:[#allocation2 + $0x8] sm:$0xff] %v143
  %178 = vst [vmem:[#allocation2 + $0x10] sm:$0xff] %v148
  %179 = vst [vmem:[#allocation2 + $0x18] sm:$0xff] %v153
  %180 = vst [vmem:[#allocation2 + $0x20] sm:$0xff] %v158
  %181 = vst [vmem:[#allocation2 + $0x28] sm:$0xff] %v163
  %182 = vst [vmem:[#allocation2 + $0x30] sm:$0xff] %v168
  %183 = vst [vmem:[#allocation2 + $0x38] sm:$0xff] %v173
  %v184 = vld [vmem:[%s2] sm:$0x1]
  %v185 = vlaneseq
  %v186 = vshrl.u32 %v185, 7
  %v187 = vsub.s32 0, %v186
  %v188 = vrot.slane %v184, %v187
  %v189 = vld [vmem:[%s2 + $0x1] sm:$0x1]
  %v190 = vlaneseq
  %v191 = vshrl.u32 %v190, 7
  %v192 = vsub.s32 0, %v191
  %v193 = vrot.slane %v189, %v192
  %v194 = vld [vmem:[%s2 + $0x2] sm:$0x1]
  %v195 = vlaneseq
  %v196 = vshrl.u32 %v195, 7
  %v197 = vsub.s32 0, %v196
  %v198 = vrot.slane %v194, %v197
  %v199 = vld [vmem:[#allocation3] sm:$0xff]
  %v200 = vld [vmem:[#allocation4] sm:$0xff]
  %202 = vset.pattern.permute.xlu0 0
  %203 = vperm.xlu0 %202, %v199
  %v204 = vpop.permute.xlu0 %203
  %v206 = vmul.f32 %v204, %v188
  %207 = vset.pattern.permute.xlu0 1
  %208 = vperm.xlu0 %207, %v199
  %v209 = vpop.permute.xlu0 %208
  %v211 = vmul.f32 %v209, %v193
  %v212 = vadd.f32 %v206, %v211
  %213 = vset.pattern.permute.xlu0 2
  %214 = vperm.xlu0 %213, %v199
  %v215 = vpop.permute.xlu0 %214
  %v217 = vmul.f32 %v215, %v198
  %v218 = vadd.f32 %v212, %v217
  %v219 = vld [vmem:[#allocation2] sm:$0xff]
  %v220 = vadd.f32 %v219, %v218
  %v221 = vxor.u32 %v220, 2147483648
  %v222 = vmul.f32 %v221, 1.442695
  %v223 = vpow.pop %v222
  %v224 = vadd.f32 %v223, 1.0
  %v225 = vrcp.pop %v224
  %v226 = vmul.f32 1.0, %v225
  %v227 = vtanh.pop %v220
  %229 = vrot.lane.b32.xlu0 %v200, 32
  %v230 = vpop.permute.xlu0 %229
  %v232 = vmul.f32 %v226, %v230
  %234 = vrot.lane.b32.xlu0 %v227, 64
  %v235 = vpop.permute.xlu0 %234
  %v237 = vmul.f32 %v226, %v235
  %239 = vrot.lane.b32.xlu0 %v237, 32
  %v240 = vpop.permute.xlu0 %239
  %v242 = vadd.f32 %v232, %v240
  %v243 = vtanh.pop %v242
  %245 = vrot.lane.b32.xlu0 %v243, 64
  %v246 = vpop.permute.xlu0 %245
  %v248 = vmul.f32 %v226, %v246
  %250 = vset.pattern.permute.xlu0 96
  %251 = vperm.xlu0 %250, %v248
  %v252 = vpop.permute.xlu0 %251
  %v254 = vmul.f32 %v252, %v188
  %255 = vset.pattern.permute.xlu0 97
  %256 = vperm.xlu0 %255, %v248
  %v257 = vpop.permute.xlu0 %256
  %v259 = vmul.f32 %v257, %v193
  %v260 = vadd.f32 %v254, %v259
  %261 = vset.pattern.permute.xlu0 98
  %262 = vperm.xlu0 %261, %v248
  %v263 = vpop.permute.xlu0 %262
  %v265 = vmul.f32 %v263, %v198
  %v266 = vadd.f32 %v260, %v265
  %v267 = vld [vmem:[#allocation2 + $0x8] sm:$0xff]
  %v268 = vadd.f32 %v267, %v266
  %v269 = vxor.u32 %v268, 2147483648
  %v270 = vmul.f32 %v269, 1.442695
  %v271 = vpow.pop %v270
  %v272 = vadd.f32 %v271, 1.0
  %v273 = vrcp.pop %v272
  %v274 = vmul.f32 1.0, %v273
  %v275 = vtanh.pop %v268
  %v276 = vmul.f32 %v274, %v242
  %278 = vrot.lane.b32.xlu0 %v275, 64
  %v279 = vpop.permute.xlu0 %278
  %v281 = vmul.f32 %v274, %v279
  %283 = vrot.lane.b32.xlu0 %v281, 32
  %v284 = vpop.permute.xlu0 %283
  %v286 = vadd.f32 %v276, %v284
  %v287 = vtanh.pop %v286
  %289 = vrot.lane.b32.xlu0 %v287, 64
  %v290 = vpop.permute.xlu0 %289
  %v292 = vmul.f32 %v274, %v290
  %294 = vset.pattern.permute.xlu0 96
  %295 = vperm.xlu0 %294, %v292
  %v296 = vpop.permute.xlu0 %295
  %v298 = vmul.f32 %v296, %v188
  %299 = vset.pattern.permute.xlu0 97
  %300 = vperm.xlu0 %299, %v292
  %v301 = vpop.permute.xlu0 %300
  %v303 = vmul.f32 %v301, %v193
  %v304 = vadd.f32 %v298, %v303
  %305 = vset.pattern.permute.xlu0 98
  %306 = vperm.xlu0 %305, %v292
  %v307 = vpop.permute.xlu0 %306
  %v309 = vmul.f32 %v307, %v198
  %v310 = vadd.f32 %v304, %v309
  %v311 = vld [vmem:[#allocation2 + $0x10] sm:$0xff]
  %v312 = vadd.f32 %v311, %v310
  %v313 = vxor.u32 %v312, 2147483648
  %v314 = vmul.f32 %v313, 1.442695
  %v315 = vpow.pop %v314
  %v316 = vadd.f32 %v315, 1.0
  %v317 = vrcp.pop %v316
  %v318 = vmul.f32 1.0, %v317
  %v319 = vtanh.pop %v312
  %v320 = vmul.f32 %v318, %v286
  %322 = vrot.lane.b32.xlu0 %v319, 64
  %v323 = vpop.permute.xlu0 %322
  %v325 = vmul.f32 %v318, %v323
  %327 = vrot.lane.b32.xlu0 %v325, 32
  %v328 = vpop.permute.xlu0 %327
  %v330 = vadd.f32 %v320, %v328
  %v331 = vtanh.pop %v330
  %333 = vrot.lane.b32.xlu0 %v331, 64
  %v334 = vpop.permute.xlu0 %333
  %v336 = vmul.f32 %v318, %v334
  %338 = vset.pattern.permute.xlu0 96
  %339 = vperm.xlu0 %338, %v336
  %v340 = vpop.permute.xlu0 %339
  %v342 = vmul.f32 %v340, %v188
  %343 = vset.pattern.permute.xlu0 97
  %344 = vperm.xlu0 %343, %v336
  %v345 = vpop.permute.xlu0 %344
  %v347 = vmul.f32 %v345, %v193
  %v348 = vadd.f32 %v342, %v347
  %349 = vset.pattern.permute.xlu0 98
  %350 = vperm.xlu0 %349, %v336
  %v351 = vpop.permute.xlu0 %350
  %v353 = vmul.f32 %v351, %v198
  %v354 = vadd.f32 %v348, %v353
  %v355 = vld [vmem:[#allocation2 + $0x18] sm:$0xff]
  %v356 = vadd.f32 %v355, %v354
  %v357 = vxor.u32 %v356, 2147483648
  %v358 = vmul.f32 %v357, 1.442695
  %v359 = vpow.pop %v358
  %v360 = vadd.f32 %v359, 1.0
  %v361 = vrcp.pop %v360
  %v362 = vmul.f32 1.0, %v361
  %v363 = vtanh.pop %v356
  %v364 = vmul.f32 %v362, %v330
  %366 = vrot.lane.b32.xlu0 %v363, 64
  %v367 = vpop.permute.xlu0 %366
  %v369 = vmul.f32 %v362, %v367
  %371 = vrot.lane.b32.xlu0 %v369, 32
  %v372 = vpop.permute.xlu0 %371
  %v374 = vadd.f32 %v364, %v372
  %v375 = vtanh.pop %v374
  %377 = vrot.lane.b32.xlu0 %v375, 64
  %v378 = vpop.permute.xlu0 %377
  %v380 = vmul.f32 %v362, %v378
  %382 = vset.pattern.permute.xlu0 96
  %383 = vperm.xlu0 %382, %v380
  %v384 = vpop.permute.xlu0 %383
  %v386 = vmul.f32 %v384, %v188
  %387 = vset.pattern.permute.xlu0 97
  %388 = vperm.xlu0 %387, %v380
  %v389 = vpop.permute.xlu0 %388
  %v391 = vmul.f32 %v389, %v193
  %v392 = vadd.f32 %v386, %v391
  %393 = vset.pattern.permute.xlu0 98
  %394 = vperm.xlu0 %393, %v380
  %v395 = vpop.permute.xlu0 %394
  %v397 = vmul.f32 %v395, %v198
  %v398 = vadd.f32 %v392, %v397
  %v399 = vld [vmem:[#allocation2 + $0x20] sm:$0xff]
  %v400 = vadd.f32 %v399, %v398
  %v401 = vxor.u32 %v400, 2147483648
  %v402 = vmul.f32 %v401, 1.442695
  %v403 = vpow.pop %v402
  %v404 = vadd.f32 %v403, 1.0
  %v405 = vrcp.pop %v404
  %v406 = vmul.f32 1.0, %v405
  %v407 = vtanh.pop %v400
  %v408 = vmul.f32 %v406, %v374
  %410 = vrot.lane.b32.xlu0 %v407, 64
  %v411 = vpop.permute.xlu0 %410
  %v413 = vmul.f32 %v406, %v411
  %415 = vrot.lane.b32.xlu0 %v413, 32
  %v416 = vpop.permute.xlu0 %415
  %v418 = vadd.f32 %v408, %v416
  %v419 = vtanh.pop %v418
  %421 = vrot.lane.b32.xlu0 %v419, 64
  %v422 = vpop.permute.xlu0 %421
  %v424 = vmul.f32 %v406, %v422
  %426 = vset.pattern.permute.xlu0 96
  %427 = vperm.xlu0 %426, %v424
  %v428 = vpop.permute.xlu0 %427
  %v430 = vmul.f32 %v428, %v188
  %431 = vset.pattern.permute.xlu0 97
  %432 = vperm.xlu0 %431, %v424
  %v433 = vpop.permute.xlu0 %432
  %v435 = vmul.f32 %v433, %v193
  %v436 = vadd.f32 %v430, %v435
  %437 = vset.pattern.permute.xlu0 98
  %438 = vperm.xlu0 %437, %v424
  %v439 = vpop.permute.xlu0 %438
  %v441 = vmul.f32 %v439, %v198
  %v442 = vadd.f32 %v436, %v441
  %v443 = vld [vmem:[#allocation2 + $0x28] sm:$0xff]
  %v444 = vadd.f32 %v443, %v442
  %v445 = vxor.u32 %v444, 2147483648
  %v446 = vmul.f32 %v445, 1.442695
  %v447 = vpow.pop %v446
  %v448 = vadd.f32 %v447, 1.0
  %v449 = vrcp.pop %v448
  %v450 = vmul.f32 1.0, %v449
  %v451 = vtanh.pop %v444
  %v452 = vmul.f32 %v450, %v418
  %454 = vrot.lane.b32.xlu0 %v451, 64
  %v455 = vpop.permute.xlu0 %454
  %v457 = vmul.f32 %v450, %v455
  %459 = vrot.lane.b32.xlu0 %v457, 32
  %v460 = vpop.permute.xlu0 %459
  %v462 = vadd.f32 %v452, %v460
  %v463 = vtanh.pop %v462
  %465 = vrot.lane.b32.xlu0 %v463, 64
  %v466 = vpop.permute.xlu0 %465
  %v468 = vmul.f32 %v450, %v466
  %470 = vset.pattern.permute.xlu0 96
  %471 = vperm.xlu0 %470, %v468
  %v472 = vpop.permute.xlu0 %471
  %v474 = vmul.f32 %v472, %v188
  %475 = vset.pattern.permute.xlu0 97
  %476 = vperm.xlu0 %475, %v468
  %v477 = vpop.permute.xlu0 %476
  %v479 = vmul.f32 %v477, %v193
  %v480 = vadd.f32 %v474, %v479
  %481 = vset.pattern.permute.xlu0 98
  %482 = vperm.xlu0 %481, %v468
  %v483 = vpop.permute.xlu0 %482
  %v485 = vmul.f32 %v483, %v198
  %v486 = vadd.f32 %v480, %v485
  %v487 = vld [vmem:[#allocation2 + $0x30] sm:$0xff]
  %v488 = vadd.f32 %v487, %v486
  %v489 = vxor.u32 %v488, 2147483648
  %v490 = vmul.f32 %v489, 1.442695
  %v491 = vpow.pop %v490
  %v492 = vadd.f32 %v491, 1.0
  %v493 = vrcp.pop %v492
  %v494 = vmul.f32 1.0, %v493
  %v495 = vtanh.pop %v488
  %v496 = vmul.f32 %v494, %v462
  %498 = vrot.lane.b32.xlu0 %v495, 64
  %v499 = vpop.permute.xlu0 %498
  %v501 = vmul.f32 %v494, %v499
  %503 = vrot.lane.b32.xlu0 %v501, 32
  %v504 = vpop.permute.xlu0 %503
  %v506 = vadd.f32 %v496, %v504
  %v507 = vtanh.pop %v506
  %509 = vrot.lane.b32.xlu0 %v507, 64
  %v510 = vpop.permute.xlu0 %509
  %v512 = vmul.f32 %v494, %v510
  %514 = vset.pattern.permute.xlu0 96
  %515 = vperm.xlu0 %514, %v512
  %v516 = vpop.permute.xlu0 %515
  %v518 = vmul.f32 %v516, %v188
  %519 = vset.pattern.permute.xlu0 97
  %520 = vperm.xlu0 %519, %v512
  %v521 = vpop.permute.xlu0 %520
  %v523 = vmul.f32 %v521, %v193
  %v524 = vadd.f32 %v518, %v523
  %525 = vset.pattern.permute.xlu0 98
  %526 = vperm.xlu0 %525, %v512
  %v527 = vpop.permute.xlu0 %526
  %v529 = vmul.f32 %v527, %v198
  %v530 = vadd.f32 %v524, %v529
  %v531 = vld [vmem:[#allocation2 + $0x38] sm:$0xff]
  %v532 = vadd.f32 %v531, %v530
  %v533 = vxor.u32 %v532, 2147483648
  %v534 = vmul.f32 %v533, 1.442695
  %v535 = vpow.pop %v534
  %v536 = vadd.f32 %v535, 1.0
  %v537 = vrcp.pop %v536
  %v538 = vmul.f32 1.0, %v537
  %v539 = vtanh.pop %v532
  %v540 = vmul.f32 %v538, %v506
  %542 = vrot.lane.b32.xlu0 %v539, 64
  %v543 = vpop.permute.xlu0 %542
  %v545 = vmul.f32 %v538, %v543
  %547 = vrot.lane.b32.xlu0 %v545, 32
  %v548 = vpop.permute.xlu0 %547
  %v550 = vadd.f32 %v540, %v548
  %v551 = vtanh.pop %v550
  %553 = vrot.lane.b32.xlu0 %v551, 64
  %v554 = vpop.permute.xlu0 %553
  %v556 = vmul.f32 %v538, %v554
  %558 = vrot.lane.b32.xlu0 %v556, 32
  %v559 = vpop.permute.xlu0 %558
  %vm561 = vcmask 261120
  %562 = vst.msk [vmem:[#allocation3] sm:$0xff] %vm561, %v559
  %564 = vrot.lane.b32.xlu0 %v550, 96
  %v565 = vpop.permute.xlu0 %564
  %567 = vst.msk [vmem:[#allocation4] sm:$0xff] %vm561, %v565
  // Predicated region
  $region30: #{energy_lstm_forward.1} parent=0 // pred_check
    %p568 = pneg %p23
  $region31: #{energy_lstm_forward.1} parent=0 // pred_check_branch
    %570 = sbr.rel (%p568) target = $region33
  $region32: #{energy_lstm_forward.1} parent=0 // pred_region
    %v571 = vld [vmem:[%s5] sm:$0x1]
    %v573 = vlaneseq
    %v574 = vshrl.u32 %v573, 7
    %v575 = vsub.s32 0, %v574
    %v576 = vrot.slane %v571, %v575
    %v578 = vld [vmem:[%s4] sm:$0x1]
    %v579 = vlaneseq
    %v580 = vshrl.u32 %v579, 7
    %v581 = vsub.s32 0, %v580
    %v582 = vrot.slane %v578, %v581
    %583 = vset.pattern.permute.xlu0 96
    %584 = vperm.xlu0 %583, %v556
    %v585 = vpop.permute.xlu0 %584
    %v587 = vmul.f32 %v585, %v582
    %v588 = vadd.f32 %v576, %v587
    %v589 = vld [vmem:[%s4 + $0x1] sm:$0x1]
    %v590 = vlaneseq
    %v591 = vshrl.u32 %v590, 7
    %v592 = vsub.s32 0, %v591
    %v593 = vrot.slane %v589, %v592
    %594 = vset.pattern.permute.xlu0 97
    %595 = vperm.xlu0 %594, %v556
    %v596 = vpop.permute.xlu0 %595
    %v598 = vmul.f32 %v596, %v593
    %v599 = vadd.f32 %v588, %v598
    %v600 = vld [vmem:[%s4 + $0x2] sm:$0x1]
    %v601 = vlaneseq
    %v602 = vshrl.u32 %v601, 7
    %v603 = vsub.s32 0, %v602
    %v604 = vrot.slane %v600, %v603
    %605 = vset.pattern.permute.xlu0 98
    %606 = vperm.xlu0 %605, %v556
    %v607 = vpop.permute.xlu0 %606
    %v609 = vmul.f32 %v607, %v604
    %v610 = vadd.f32 %v599, %v609
    %611 = vst [vmem:[%s6] sm:$0xff] %v610
  $region33: #{energy_lstm_forward.1} parent=0 // pred_fallthru
    _
  // Predicated region
  $region34: #{energy_lstm_forward.1} parent=0 // pred_check
    _
  $region35: #{energy_lstm_forward.1} parent=0 // pred_check_branch
    %613 = sbr.rel (0) target = $region37
  $region36: #{energy_lstm_forward.1} parent=0 // pred_region
    _
  $region37: #{energy_lstm_forward.1} parent=0 // pred_fallthru
    _
  // Predicated region
  $region38: #{energy_lstm_forward.1} parent=0 // pred_check
    _
  $region39: #{energy_lstm_forward.1} parent=0 // pred_check_branch
    %615 = sbr.rel (0) target = $region41
  $region40: #{energy_lstm_forward.1} parent=0 // pred_region
    _
  $region41: #{energy_lstm_forward.1} parent=0 // pred_fallthru
    _

</llo_original>
